<compile_context>
chip_gen: v6e
topology: v6e:2x2x1
jax: 0.10.0
libtpu: 0.0.40
codegen_flags: <defaults>
</compile_context>

<pallas_src>
import functools
import math

import jax
import jax.numpy as jnp
from jax.experimental import pallas as pl
from jax.experimental.pallas import tpu as pltpu

_LOG_PI = math.log(math.pi)

# Lanczos g=7, n=9 coefficients.
_LANCZOS_G = 7.0
_LANCZOS_C = (
    0.99999999999980993,
    676.5203681218851,
    -1259.1392167224028,
    771.32342877765313,
    -176.61502916214059,
    12.507343278686905,
    -0.13857109526572012,
    9.9843695780195716e-6,
    1.5056327351493116e-7,
)


def _poly_mul(p, q):
    r = [0.0] * (len(p) + len(q) - 1)
    for i, a in enumerate(p):
        for j, b in enumerate(q):
            r[i + j] += a * b
    return r


def _lanczos_numerator_coeffs():
    """Coefficients (low->high degree) of N(z) such that
    A(z) = c0 + sum_k ck/(z+k) = N(z) / D(z),  D(z) = prod_{k=1..8}(z+k).

    Computed once in double precision at import time; the kernel only does
    Horner mul/adds (VALU) plus a couple of divides/logs (EUP)."""
    d_full = [1.0]
    for k in range(1, 9):
        d_full = _poly_mul(d_full, [float(k), 1.0])
    num = [_LANCZOS_C[0] * c for c in d_full]  # degree 8
    for k in range(1, 9):
        partial = [1.0]
        for j in range(1, 9):
            if j != k:
                partial = _poly_mul(partial, [float(j), 1.0])
        for i, v in enumerate(partial):
            num[i] += _LANCZOS_C[k] * v
    return tuple(num)


_LANCZOS_NUM = _lanczos_numerator_coeffs()


def _lanczos_num_den(z):
    """N(z) via Horner and D(z) via running product (all VALU work)."""
    n = jnp.full_like(z, _LANCZOS_NUM[-1])
    for c in reversed(_LANCZOS_NUM[:-1]):
        n = n * z + c
    d = z + 1.0
    for k in range(2, 9):
        d = d * (z + float(k))
    return n, d


def _lgamma_diff(alpha):
    """lgamma(alpha) - lgamma(alpha + 0.5) for alpha > 0 (Lanczos g=7, n=9).

    3 logs + 2 divides per element.  No reflection: accuracy degrades as
    alpha -> 0, which is fine for evidential heads where alpha is bounded
    away from 0.  Ratios (n1/n2)*(d2/d1) are taken separately to avoid f32
    overflow of D(z)^2 for very large alpha."""
    z1 = alpha - 1.0
    z2 = alpha - 0.5
    n1, d1 = _lanczos_num_den(z1)
    n2, d2 = _lanczos_num_den(z2)
    t1 = alpha + (_LANCZOS_G - 0.5)      # = z1 + g + 0.5
    t2 = alpha + _LANCZOS_G              # = z2 + g + 0.5
    # lgamma(x) = log(sqrt(2*pi)) + (z+0.5)*log(t) - t + log(N(z)/D(z));
    # the sqrt(2*pi) terms cancel, and t2 - t1 = 0.5.
    return ((alpha - 0.5) * jnp.log(t1) - alpha * jnp.log(t2) + 0.5
            + jnp.log((n1 / n2) * (d2 / d1)))


def _edl_kernel(logits_ref, targets_ref, out_ref, *, annealing, eps):
    # logits_ref block: (4, TR, 128); targets_ref block: (TR, 128)
    # out_ref block: (depth, TR, 128) with depth = 1 (annealing==0) or 2.
    gamma = logits_ref[0]
    nu = logits_ref[1]
    alpha = logits_ref[2]
    beta = logits_ref[3]
    t = targets_ref[...]

    # --- nll_regression_loss ---
    omega = 2.0 * beta * (1.0 + nu)
    diff = t - gamma
    nll = (
        0.5 * (_LOG_PI - jnp.log(nu + 1e-5))
        - alpha * jnp.log(omega)
        + (alpha + 0.5) * jnp.log(nu * diff * diff + omega)
        + _lgamma_diff(alpha)
    )
    nll = jnp.maximum(nll, 0.0)  # torch.clamp(nll, min=0)

    if annealing == 0.0:
        # Default config (w=0, iteration=None): total == nll; skip the kld
        # math and emit a single output slab.
        out_ref[0] = nll
    else:
        # --- kld_regression_loss (kl_mode == 'evd') ---
        kld = jnp.abs(diff + eps) * (2.0 * nu + alpha)
        out_ref[0] = nll + annealing * kld
        out_ref[1] = nll


_LANES = 128
_MAX_BLOCK_ROWS = 256  # 256*128 f32 elems/block -> ~1.8 MiB double-buffered


def edl_regression_loss(logits, targets, *, w=0.0, iteration=None, T=50000,
                        eps=1e-6, logspace=False):
    """JAX/Pallas equivalent of EDLRegressionLoss.forward (kl_mode='evd').

    `iteration` must be a static Python number (annealing is folded into the
    kernel at trace time, matching the PyTorch min()/float() behavior)."""
    logits = jnp.asarray(logits, jnp.float32).reshape(-1, 4)
    targets = jnp.asarray(targets, jnp.float32)
    assert targets.ndim == 1
    n = logits.shape[0]
    assert targets.shape[0] == n

    p_true = jnp.log(targets + 1e-6) if logspace else targets

    if iteration is not None:
        annealing = min(1.0, float(iteration) / T)
    else:
        annealing = float(w)

    # --- choose a sublane-dense tiling -----------------------------------
    rows = -(-n // _LANES)                       # 128-lane rows needed
    if rows > _MAX_BLOCK_ROWS:
        block_rows = _MAX_BLOCK_ROWS             # grid >= 2 automatically
    else:
        # Small inputs: aim for 2 grid steps (multiple-of-8 rows each) so a
        # v7x chip can shard the "parallel" grid axis over both TensorCores.
        half = -(-rows // 2)
        block_rows = max(8, -(-half // 8) * 8)
    rows_pad = -(-rows // block_rows) * block_rows
    n_pad = rows_pad * _LANES
    pad = n_pad - n

    # --- wrapper-side layout plumbing -------------------------------------
    # TODO(synk): logits.T is a full read+write of the input ahead of the
    # kernel (~1.5x ideal HBM traffic); it could be removed by emitting the
    # evidential head in (4, N) layout upstream or fusing the transpose.
    logits_t = logits.T                                       # (4, N)
    logits_p = jnp.pad(logits_t, ((0, 0), (0, pad)), constant_values=1.0)
    targets_p = jnp.pad(p_true, (0, pad))
    logits_3d = logits_p.reshape(4, rows_pad, _LANES)
    targets_2d = targets_p.reshape(rows_pad, _LANES)

    out_depth = 1 if annealing == 0.0 else 2
    grid = (rows_pad // block_rows,)
    kernel = functools.partial(_edl_kernel, annealing=annealing, eps=eps)

    out = pl.pallas_call(
        kernel,
        out_shape=jax.ShapeDtypeStruct((out_depth, rows_pad, _LANES),
                                       jnp.float32),
        grid_spec=pltpu.PrefetchScalarGridSpec(
            num_scalar_prefetch=0,
            grid=grid,
            in_specs=[
                pl.BlockSpec((4, block_rows, _LANES), lambda i: (0, i, 0)),
                pl.BlockSpec((block_rows, _LANES), lambda i: (i, 0)),
            ],
            out_specs=pl.BlockSpec((out_depth, block_rows, _LANES),
                                   lambda i: (0, i, 0)),
        ),
        compiler_params=pltpu.CompilerParams(
            dimension_semantics=("parallel",)),
    )(logits_3d, targets_2d)

    flat = out.reshape(out_depth, n_pad)
    total = flat[0, :n]
    nll = flat[out_depth - 1, :n]
    return total, nll


def _reference(logits, targets, annealing, eps=1e-6):
    """Pure-JAX reference mirroring the PyTorch code."""
    from jax.scipy.special import gammaln
    logits = jnp.asarray(logits, jnp.float32).reshape(-1, 4)
    gamma, nu, alpha, beta = (logits[:, 0], logits[:, 1],
                              logits[:, 2], logits[:, 3])
    omega = 2.0 * beta * (1.0 + nu)
    nll = (0.5 * (jnp.log(jnp.pi) - jnp.log(nu + 1e-5))
           - alpha * jnp.log(omega)
           + (alpha + 0.5) * jnp.log(nu * (targets - gamma) ** 2 + omega)
           + gammaln(alpha) - gammaln(alpha + 0.5))
    nll = jnp.maximum(nll, 0.0)
    kld = jnp.abs(targets - gamma + eps) * (2.0 * nu + alpha)
    return nll + annealing * kld, nll


if __name__ == "__main__":
    key = jax.random.PRNGKey(0)
    k1, k2, k3 = jax.random.split(key, 3)

    # N = 200 samples, logits shaped (N, 4) as the forward's view(-1, 4) implies.
    N = 200
    gamma = jax.random.normal(k1, (N,), jnp.float32)
    # nu, alpha, beta positive (post-activation evidential parameters).
    rest = jax.nn.softplus(jax.random.normal(k2, (N, 3), jnp.float32)) + 0.5
    logits = jnp.concatenate([gamma[:, None], rest], axis=1)  # (N, 4)
    targets = jax.random.normal(k3, (N,), jnp.float32)

    # Case 1: non-trivial annealing = min(1, 25000/50000) = 0.5
    total, nll = edl_regression_loss(logits, targets, iteration=25000, T=50000)
    total = jax.block_until_ready(total)
    nll = jax.block_until_ready(nll)
    ref_total, ref_nll = _reference(logits, targets, annealing=0.5)
    assert total.shape == (N,) and nll.shape == (N,)
    assert jnp.allclose(total, ref_total, rtol=5e-3, atol=5e-3), \
        float(jnp.max(jnp.abs(total - ref_total)))
    assert jnp.allclose(nll, ref_nll, rtol=5e-3, atol=5e-3), \
        float(jnp.max(jnp.abs(nll - ref_nll)))

    # Case 2: module defaults (w=0, iteration=None) -> single-output fast path.
    total0, nll0 = edl_regression_loss(logits, targets)
    total0 = jax.block_until_ready(total0)
    nll0 = jax.block_until_ready(nll0)
    ref_total0, ref_nll0 = _reference(logits, targets, annealing=0.0)
    assert jnp.allclose(total0, ref_total0, rtol=5e-3, atol=5e-3), \
        float(jnp.max(jnp.abs(total0 - ref_total0)))
    assert jnp.allclose(nll0, ref_nll0, rtol=5e-3, atol=5e-3), \
        float(jnp.max(jnp.abs(nll0 - ref_nll0)))

    print("KERNEL_OK")
</pallas_src>

<mosaic_0001>
module attributes {stable_mosaic.version = 11 : i64} {
  func.func @_edl_kernel(%arg0: i32, %arg1: memref<4x8x128xf32, #tpu.memory_space<vmem>>, %arg2: memref<8x128xf32, #tpu.memory_space<vmem>>, %arg3: memref<2x8x128xf32, #tpu.memory_space<vmem>>) attributes {dimension_semantics = [#tpu.dimension_semantics<parallel>], iteration_bounds = array<i64: 1>, scalar_prefetch = 0 : i64, scratch_operands = 0 : i64, tpu.core_type = #tpu.core_type<tc>, window_params = [{transform_indices = @transform_0, window_bounds = array<i64: 4, 8, 128>}, {transform_indices = @transform_1, window_bounds = array<i64: 8, 128>}, {transform_indices = @transform_2, window_bounds = array<i64: 2, 8, 128>}]} {
    %c0 = arith.constant 0 : index
    %c0_0 = arith.constant 0 : index
    %c0_1 = arith.constant 0 : index
    %0 = vector.load %arg1[%c0, %c0_0, %c0_1] : memref<4x8x128xf32, #tpu.memory_space<vmem>>, vector<1x8x128xf32>
    %1 = vector.shape_cast %0 : vector<1x8x128xf32> to vector<8x128xf32>
    %c1 = arith.constant 1 : index
    %c0_2 = arith.constant 0 : index
    %c0_3 = arith.constant 0 : index
    %2 = vector.load %arg1[%c1, %c0_2, %c0_3] : memref<4x8x128xf32, #tpu.memory_space<vmem>>, vector<1x8x128xf32>
    %3 = vector.shape_cast %2 : vector<1x8x128xf32> to vector<8x128xf32>
    %c2 = arith.constant 2 : index
    %c0_4 = arith.constant 0 : index
    %c0_5 = arith.constant 0 : index
    %4 = vector.load %arg1[%c2, %c0_4, %c0_5] : memref<4x8x128xf32, #tpu.memory_space<vmem>>, vector<1x8x128xf32>
    %5 = vector.shape_cast %4 : vector<1x8x128xf32> to vector<8x128xf32>
    %c3 = arith.constant 3 : index
    %c0_6 = arith.constant 0 : index
    %c0_7 = arith.constant 0 : index
    %6 = vector.load %arg1[%c3, %c0_6, %c0_7] : memref<4x8x128xf32, #tpu.memory_space<vmem>>, vector<1x8x128xf32>
    %7 = vector.shape_cast %6 : vector<1x8x128xf32> to vector<8x128xf32>
    %c0_8 = arith.constant 0 : index
    %c0_9 = arith.constant 0 : index
    %8 = vector.load %arg2[%c0_8, %c0_9] : memref<8x128xf32, #tpu.memory_space<vmem>>, vector<8x128xf32>
    %cst = arith.constant 2.000000e+00 : f32
    %9 = vector.broadcast %cst : f32 to vector<8x128xf32>
    %10 = arith.mulf %9, %7 : vector<8x128xf32>
    %cst_10 = arith.constant 1.000000e+00 : f32
    %11 = vector.broadcast %cst_10 : f32 to vector<8x128xf32>
    %12 = arith.addf %11, %3 : vector<8x128xf32>
    %13 = arith.mulf %10, %12 : vector<8x128xf32>
    %14 = arith.subf %8, %1 : vector<8x128xf32>
    %cst_11 = arith.constant 9.99999974E-6 : f32
    %15 = vector.broadcast %cst_11 : f32 to vector<8x128xf32>
    %16 = arith.addf %3, %15 : vector<8x128xf32>
    %17 = math.log %16 : vector<8x128xf32>
    %cst_12 = arith.constant 1.14472985 : f32
    %18 = vector.broadcast %cst_12 : f32 to vector<8x128xf32>
    %19 = arith.subf %18, %17 : vector<8x128xf32>
    %cst_13 = arith.constant 5.000000e-01 : f32
    %20 = vector.broadcast %cst_13 : f32 to vector<8x128xf32>
    %21 = arith.mulf %20, %19 : vector<8x128xf32>
    %22 = math.log %13 : vector<8x128xf32>
    %23 = arith.mulf %5, %22 : vector<8x128xf32>
    %24 = arith.subf %21, %23 : vector<8x128xf32>
    %cst_14 = arith.constant 5.000000e-01 : f32
    %25 = vector.broadcast %cst_14 : f32 to vector<8x128xf32>
    %26 = arith.addf %5, %25 : vector<8x128xf32>
    %27 = arith.mulf %3, %14 : vector<8x128xf32>
    %28 = arith.mulf %27, %14 : vector<8x128xf32>
    %29 = arith.addf %28, %13 : vector<8x128xf32>
    %30 = math.log %29 : vector<8x128xf32>
    %31 = arith.mulf %26, %30 : vector<8x128xf32>
    %32 = arith.addf %24, %31 : vector<8x128xf32>
    %cst_15 = arith.constant 1.000000e+00 : f32
    %33 = vector.broadcast %cst_15 : f32 to vector<8x128xf32>
    %34 = arith.subf %5, %33 : vector<8x128xf32>
    %cst_16 = arith.constant 5.000000e-01 : f32
    %35 = vector.broadcast %cst_16 : f32 to vector<8x128xf32>
    %36 = arith.subf %5, %35 : vector<8x128xf32>
    %cst_17 = arith.constant 1.000000e+00 : f32
    %37 = vector.broadcast %cst_17 : f32 to vector<8x128xf32>
    %38 = arith.mulf %37, %34 : vector<8x128xf32>
    %cst_18 = arith.constant 60.4583321 : f32
    %39 = vector.broadcast %cst_18 : f32 to vector<8x128xf32>
    %40 = arith.addf %38, %39 : vector<8x128xf32>
    %41 = arith.mulf %40, %34 : vector<8x128xf32>
    %cst_19 = arith.constant 1599.04248 : f32
    %42 = vector.broadcast %cst_19 : f32 to vector<8x128xf32>
    %43 = arith.addf %41, %42 : vector<8x128xf32>
    %44 = arith.mulf %43, %34 : vector<8x128xf32>
    %cst_20 = arith.constant 24165.5098 : f32
    %45 = vector.broadcast %cst_20 : f32 to vector<8x128xf32>
    %46 = arith.addf %44, %45 : vector<8x128xf32>
    %47 = arith.mulf %46, %34 : vector<8x128xf32>
    %cst_21 = arith.constant 228235.219 : f32
    %48 = vector.broadcast %cst_21 : f32 to vector<8x128xf32>
    %49 = arith.addf %47, %48 : vector<8x128xf32>
    %50 = arith.mulf %49, %34 : vector<8x128xf32>
    %cst_22 = arith.constant 1379496.25 : f32
    %51 = vector.broadcast %cst_22 : f32 to vector<8x128xf32>
    %52 = arith.addf %50, %51 : vector<8x128xf32>
    %53 = arith.mulf %52, %34 : vector<8x128xf32>
    %cst_23 = arith.constant 0x4A9F05EA : f32
    %54 = vector.broadcast %cst_23 : f32 to vector<8x128xf32>
    %55 = arith.addf %53, %54 : vector<8x128xf32>
    %56 = arith.mulf %55, %34 : vector<8x128xf32>
    %cst_24 = arith.constant 0x4B2B9D51 : f32
    %57 = vector.broadcast %cst_24 : f32 to vector<8x128xf32>
    %58 = arith.addf %56, %57 : vector<8x128xf32>
    %59 = arith.mulf %58, %34 : vector<8x128xf32>
    %cst_25 = arith.constant 0x4B220ADA : f32
    %60 = vector.broadcast %cst_25 : f32 to vector<8x128xf32>
    %61 = arith.addf %59, %60 : vector<8x128xf32>
    %cst_26 = arith.constant 1.000000e+00 : f32
    %62 = vector.broadcast %cst_26 : f32 to vector<8x128xf32>
    %63 = arith.addf %34, %62 : vector<8x128xf32>
    %cst_27 = arith.constant 2.000000e+00 : f32
    %64 = vector.broadcast %cst_27 : f32 to vector<8x128xf32>
    %65 = arith.addf %34, %64 : vector<8x128xf32>
    %66 = arith.mulf %63, %65 : vector<8x128xf32>
    %cst_28 = arith.constant 3.000000e+00 : f32
    %67 = vector.broadcast %cst_28 : f32 to vector<8x128xf32>
    %68 = arith.addf %34, %67 : vector<8x128xf32>
    %69 = arith.mulf %66, %68 : vector<8x128xf32>
    %cst_29 = arith.constant 4.000000e+00 : f32
    %70 = vector.broadcast %cst_29 : f32 to vector<8x128xf32>
    %71 = arith.addf %34, %70 : vector<8x128xf32>
    %72 = arith.mulf %69, %71 : vector<8x128xf32>
    %cst_30 = arith.constant 5.000000e+00 : f32
    %73 = vector.broadcast %cst_30 : f32 to vector<8x128xf32>
    %74 = arith.addf %34, %73 : vector<8x128xf32>
    %75 = arith.mulf %72, %74 : vector<8x128xf32>
    %cst_31 = arith.constant 6.000000e+00 : f32
    %76 = vector.broadcast %cst_31 : f32 to vector<8x128xf32>
    %77 = arith.addf %34, %76 : vector<8x128xf32>
    %78 = arith.mulf %75, %77 : vector<8x128xf32>
    %cst_32 = arith.constant 7.000000e+00 : f32
    %79 = vector.broadcast %cst_32 : f32 to vector<8x128xf32>
    %80 = arith.addf %34, %79 : vector<8x128xf32>
    %81 = arith.mulf %78, %80 : vector<8x128xf32>
    %cst_33 = arith.constant 8.000000e+00 : f32
    %82 = vector.broadcast %cst_33 : f32 to vector<8x128xf32>
    %83 = arith.addf %34, %82 : vector<8x128xf32>
    %84 = arith.mulf %81, %83 : vector<8x128xf32>
    %cst_34 = arith.constant 1.000000e+00 : f32
    %85 = vector.broadcast %cst_34 : f32 to vector<8x128xf32>
    %86 = arith.mulf %85, %36 : vector<8x128xf32>
    %cst_35 = arith.constant 60.4583321 : f32
    %87 = vector.broadcast %cst_35 : f32 to vector<8x128xf32>
    %88 = arith.addf %86, %87 : vector<8x128xf32>
    %89 = arith.mulf %88, %36 : vector<8x128xf32>
    %cst_36 = arith.constant 1599.04248 : f32
    %90 = vector.broadcast %cst_36 : f32 to vector<8x128xf32>
    %91 = arith.addf %89, %90 : vector<8x128xf32>
    %92 = arith.mulf %91, %36 : vector<8x128xf32>
    %cst_37 = arith.constant 24165.5098 : f32
    %93 = vector.broadcast %cst_37 : f32 to vector<8x128xf32>
    %94 = arith.addf %92, %93 : vector<8x128xf32>
    %95 = arith.mulf %94, %36 : vector<8x128xf32>
    %cst_38 = arith.constant 228235.219 : f32
    %96 = vector.broadcast %cst_38 : f32 to vector<8x128xf32>
    %97 = arith.addf %95, %96 : vector<8x128xf32>
    %98 = arith.mulf %97, %36 : vector<8x128xf32>
    %cst_39 = arith.constant 1379496.25 : f32
    %99 = vector.broadcast %cst_39 : f32 to vector<8x128xf32>
    %100 = arith.addf %98, %99 : vector<8x128xf32>
    %101 = arith.mulf %100, %36 : vector<8x128xf32>
    %cst_40 = arith.constant 0x4A9F05EA : f32
    %102 = vector.broadcast %cst_40 : f32 to vector<8x128xf32>
    %103 = arith.addf %101, %102 : vector<8x128xf32>
    %104 = arith.mulf %103, %36 : vector<8x128xf32>
    %cst_41 = arith.constant 0x4B2B9D51 : f32
    %105 = vector.broadcast %cst_41 : f32 to vector<8x128xf32>
    %106 = arith.addf %104, %105 : vector<8x128xf32>
    %107 = arith.mulf %106, %36 : vector<8x128xf32>
    %cst_42 = arith.constant 0x4B220ADA : f32
    %108 = vector.broadcast %cst_42 : f32 to vector<8x128xf32>
    %109 = arith.addf %107, %108 : vector<8x128xf32>
    %cst_43 = arith.constant 1.000000e+00 : f32
    %110 = vector.broadcast %cst_43 : f32 to vector<8x128xf32>
    %111 = arith.addf %36, %110 : vector<8x128xf32>
    %cst_44 = arith.constant 2.000000e+00 : f32
    %112 = vector.broadcast %cst_44 : f32 to vector<8x128xf32>
    %113 = arith.addf %36, %112 : vector<8x128xf32>
    %114 = arith.mulf %111, %113 : vector<8x128xf32>
    %cst_45 = arith.constant 3.000000e+00 : f32
    %115 = vector.broadcast %cst_45 : f32 to vector<8x128xf32>
    %116 = arith.addf %36, %115 : vector<8x128xf32>
    %117 = arith.mulf %114, %116 : vector<8x128xf32>
    %cst_46 = arith.constant 4.000000e+00 : f32
    %118 = vector.broadcast %cst_46 : f32 to vector<8x128xf32>
    %119 = arith.addf %36, %118 : vector<8x128xf32>
    %120 = arith.mulf %117, %119 : vector<8x128xf32>
    %cst_47 = arith.constant 5.000000e+00 : f32
    %121 = vector.broadcast %cst_47 : f32 to vector<8x128xf32>
    %122 = arith.addf %36, %121 : vector<8x128xf32>
    %123 = arith.mulf %120, %122 : vector<8x128xf32>
    %cst_48 = arith.constant 6.000000e+00 : f32
    %124 = vector.broadcast %cst_48 : f32 to vector<8x128xf32>
    %125 = arith.addf %36, %124 : vector<8x128xf32>
    %126 = arith.mulf %123, %125 : vector<8x128xf32>
    %cst_49 = arith.constant 7.000000e+00 : f32
    %127 = vector.broadcast %cst_49 : f32 to vector<8x128xf32>
    %128 = arith.addf %36, %127 : vector<8x128xf32>
    %129 = arith.mulf %126, %128 : vector<8x128xf32>
    %cst_50 = arith.constant 8.000000e+00 : f32
    %130 = vector.broadcast %cst_50 : f32 to vector<8x128xf32>
    %131 = arith.addf %36, %130 : vector<8x128xf32>
    %132 = arith.mulf %129, %131 : vector<8x128xf32>
    %cst_51 = arith.constant 6.500000e+00 : f32
    %133 = vector.broadcast %cst_51 : f32 to vector<8x128xf32>
    %134 = arith.addf %5, %133 : vector<8x128xf32>
    %cst_52 = arith.constant 7.000000e+00 : f32
    %135 = vector.broadcast %cst_52 : f32 to vector<8x128xf32>
    %136 = arith.addf %5, %135 : vector<8x128xf32>
    %cst_53 = arith.constant 5.000000e-01 : f32
    %137 = vector.broadcast %cst_53 : f32 to vector<8x128xf32>
    %138 = arith.subf %5, %137 : vector<8x128xf32>
    %139 = math.log %134 : vector<8x128xf32>
    %140 = arith.mulf %138, %139 : vector<8x128xf32>
    %141 = math.log %136 : vector<8x128xf32>
    %142 = arith.mulf %5, %141 : vector<8x128xf32>
    %143 = arith.subf %140, %142 : vector<8x128xf32>
    %cst_54 = arith.constant 5.000000e-01 : f32
    %144 = vector.broadcast %cst_54 : f32 to vector<8x128xf32>
    %145 = arith.addf %143, %144 : vector<8x128xf32>
    %146 = arith.divf %61, %109 : vector<8x128xf32>
    %147 = arith.divf %132, %84 : vector<8x128xf32>
    %148 = arith.mulf %146, %147 : vector<8x128xf32>
    %149 = math.log %148 : vector<8x128xf32>
    %150 = arith.addf %145, %149 : vector<8x128xf32>
    %151 = arith.addf %32, %150 : vector<8x128xf32>
    %cst_55 = arith.constant 0.000000e+00 : f32
    %152 = vector.broadcast %cst_55 : f32 to vector<8x128xf32>
    %153 = arith.maximumf %151, %152 : vector<8x128xf32>
    %cst_56 = arith.constant 9.99999997E-7 : f32
    %154 = vector.broadcast %cst_56 : f32 to vector<8x128xf32>
    %155 = arith.addf %14, %154 : vector<8x128xf32>
    %156 = math.absf %155 : vector<8x128xf32>
    %cst_57 = arith.constant 2.000000e+00 : f32
    %157 = vector.broadcast %cst_57 : f32 to vector<8x128xf32>
    %158 = arith.mulf %157, %3 : vector<8x128xf32>
    %159 = arith.addf %158, %5 : vector<8x128xf32>
    %160 = arith.mulf %156, %159 : vector<8x128xf32>
    %cst_58 = arith.constant 5.000000e-01 : f32
    %161 = vector.broadcast %cst_58 : f32 to vector<8x128xf32>
    %162 = arith.mulf %161, %160 : vector<8x128xf32>
    %163 = arith.addf %153, %162 : vector<8x128xf32>
    %c0_59 = arith.constant 0 : index
    %c0_60 = arith.constant 0 : index
    %c0_61 = arith.constant 0 : index
    %164 = vector.load %arg3[%c0_59, %c0_60, %c0_61] : memref<2x8x128xf32, #tpu.memory_space<vmem>>, vector<1x8x128xf32>
    %165 = vector.shape_cast %164 : vector<1x8x128xf32> to vector<8x128xf32>
    %166 = vector.shape_cast %163 : vector<8x128xf32> to vector<1x8x128xf32>
    tpu.vector_store %arg3[%c0_59, %c0_60, %c0_61], %166 {strides = array<i32>} : memref<2x8x128xf32, #tpu.memory_space<vmem>>, vector<1x8x128xf32>,
    %c1_62 = arith.constant 1 : index
    %c0_63 = arith.constant 0 : index
    %c0_64 = arith.constant 0 : index
    %167 = vector.load %arg3[%c1_62, %c0_63, %c0_64] : memref<2x8x128xf32, #tpu.memory_space<vmem>>, vector<1x8x128xf32>
    %168 = vector.shape_cast %167 : vector<1x8x128xf32> to vector<8x128xf32>
    %169 = vector.shape_cast %153 : vector<8x128xf32> to vector<1x8x128xf32>
    tpu.vector_store %arg3[%c1_62, %c0_63, %c0_64], %169 {strides = array<i32>} : memref<2x8x128xf32, #tpu.memory_space<vmem>>, vector<1x8x128xf32>,
    return
  }
  func.func @transform_0(%arg0: i32) -> (i32, i32, i32) {
    %c0_i32 = arith.constant 0 : i32
    %c0_i32_0 = arith.constant 0 : i32
    %c0_i32_1 = arith.constant 0 : i32
    return %c0_i32, %arg0, %c0_i32_0 : i32, i32, i32
  }
  func.func @transform_1(%arg0: i32) -> (i32, i32) {
    %c0_i32 = arith.constant 0 : i32
    %c0_i32_0 = arith.constant 0 : i32
    return %arg0, %c0_i32 : i32, i32
  }
  func.func @transform_2(%arg0: i32) -> (i32, i32, i32) {
    %c0_i32 = arith.constant 0 : i32
    %c0_i32_0 = arith.constant 0 : i32
    %c0_i32_1 = arith.constant 0 : i32
    return %c0_i32, %arg0, %c0_i32_0 : i32, i32, i32
  }
}

</mosaic_0001>

<llo_original>
// kernel: tpu_custom_call.1
$region0: #{tpu_custom_call.1}
  #allocation0 [shape = 'u32[]', space=smem, size = 0x4, offset = 0x4, fixed_abs, tag = 'smem constant byte address 0x4 - core index']
  #allocation1 [shape = 'u32[144,128]{1,0:T(1,128)}', space=vmem, size = 0x12000, scoped, tag = 'internal scratch']
  %s0 = inlined_call_operand.hbm [shape: f32[4,8,128], index: 0, kind: input, shape index: {}]
  %s1 = inlined_call_operand.hbm [shape: f32[8,128], index: 1, kind: input, shape index: {}]
  %s2 = inlined_call_operand.hbm [shape: f32[2,8,128], index: 2, kind: output, shape index: {}]
  %s3 = sld [smem:[#allocation0]]
  $region26: #{tpu_custom_call.1} parent=0
    _
  %s5 = ssub.s32 1, %s3
  %s6 = scalar_select 0, %s5, %s3
  $region1: #{tpu_custom_call.1} parent=0
    #allocation2 [shape = 'u8[16384]{0}', space=vmem, size = 0x4000, scoped, tag = 'input window, operand 0, single buffered']
    #allocation3 [shape = 's32[1]{0}', space=sflag, size = 0x4, scoped, tag = 'scoped memory for tpu_custom_call.1']
    #allocation4 [shape = 's32[1]{0}', space=sflag, size = 0x4, scoped, tag = 'scoped memory for tpu_custom_call.1']
    #allocation5 [shape = 'u8[4096]{0}', space=vmem, size = 0x1000, scoped, tag = 'input window, operand 1, single buffered']
    #allocation6 [shape = 's32[1]{0}', space=sflag, size = 0x4, scoped, tag = 'scoped memory for tpu_custom_call.1']
    #allocation7 [shape = 'u8[8192]{0}', space=vmem, size = 0x2000, scoped, tag = 'output window, operand 0, single buffered']
    %7 = vsyncpa [#allocation3], 0
    %8 = vsyncpa [#allocation6], 0
    %9 = vsyncpa [#allocation4], 0
    // Predicated region
    $region2: #{tpu_custom_call.1} parent=1 // pred_check
      _
    $region3: #{tpu_custom_call.1} parent=1 // pred_check_branch
      %11 = sbr.rel (0) target = $region5
    $region4: #{tpu_custom_call.1} parent=1 // pred_region
      %s13 = ssub.s32 512, 512
      %14 = vsyncadd [#allocation3], %s13
      %s15 = sshll.u32 [#allocation2], 4
      %s16 = int_to_ptr.vmem [resolvable:$true] %s15
      %21 = dma.hbm_to_vmem [thread:$0]  %s0, 512, %s16, [#allocation3], 128, 128, 8
    $region5: #{tpu_custom_call.1} parent=1 // pred_fallthru
      _
    // Predicated region
    $region6: #{tpu_custom_call.1} parent=1 // pred_check
      _
    $region7: #{tpu_custom_call.1} parent=1 // pred_check_branch
      %23 = sbr.rel (0) target = $region9
    $region8: #{tpu_custom_call.1} parent=1 // pred_region
      %s25 = ssub.s32 128, 128
      %26 = vsyncadd [#allocation6], %s25
      %s28 = sshll.u32 [#allocation5], 4
      %s29 = int_to_ptr.vmem [resolvable:$true] %s28
      %31 = dma.hbm_to_vmem [thread:$0]  %s1, 128, %s29, [#allocation6]
    $region9: #{tpu_custom_call.1} parent=1 // pred_fallthru
      _
    // Predicated region
    $region10: #{tpu_custom_call.1} parent=1 // pred_check
      _
    $region11: #{tpu_custom_call.1} parent=1 // pred_check_branch
      %33 = sbr.rel (0) target = $region13
    $region12: #{tpu_custom_call.1} parent=1 // pred_region
      %34 = dma.done [#allocation3], 512
    $region13: #{tpu_custom_call.1} parent=1 // pred_fallthru
      _
    // Predicated region
    $region14: #{tpu_custom_call.1} parent=1 // pred_check
      _
    $region15: #{tpu_custom_call.1} parent=1 // pred_check_branch
      %36 = sbr.rel (0) target = $region17
    $region16: #{tpu_custom_call.1} parent=1 // pred_region
      %37 = dma.done [#allocation6], 128
    $region17: #{tpu_custom_call.1} parent=1 // pred_fallthru
      _
    %v38 = vld [vmem:[#allocation2] sm:$0xff]
    %s39 = scalar_lea.vmem [#allocation2], 8
    %v40 = vld [vmem:[%s39] sm:$0xff]
    %s41 = scalar_lea.vmem [#allocation2], 16
    %v42 = vld [vmem:[%s41] sm:$0xff]
    %s43 = scalar_lea.vmem [#allocation2], 24
    %v44 = vld [vmem:[%s43] sm:$0xff]
    %v45 = vld [vmem:[#allocation5] sm:$0xff]
    %v46 = vmul.f32 %v44, 2.0
    %v47 = vadd.f32 %v40, 1.0
    %v48 = vmul.f32 %v46, %v47
    %v49 = vsub.f32 %v45, %v38
    %v50 = vadd.f32 %v40, 1e-05
    %v51 = vlog2.pop %v50
    %v52 = vmul.f32 %v51, 0.6931472
    %v53 = vsub.f32 1.1447299, %v52
    %v54 = vmul.f32 %v53, 0.5
    %v55 = vlog2.pop %v48
    %v56 = vmul.f32 %v55, 0.6931472
    %v57 = vmul.f32 %v42, %v56
    %v58 = vsub.f32 %v54, %v57
    %v59 = vadd.f32 %v42, 0.5
    %v60 = vmul.f32 %v40, %v49
    %v61 = vmul.f32 %v60, %v49
    %v62 = vadd.f32 %v61, %v48
    %v63 = vlog2.pop %v62
    %v64 = vmul.f32 %v63, 0.6931472
    %v65 = vmul.f32 %v59, %v64
    %v66 = vadd.f32 %v58, %v65
    %v67 = vsub.f32 %v42, 1.0
    %v68 = vsub.f32 %v42, 0.5
    %v69 = vadd.f32 %v67, 60.458332
    %v70 = vmul.f32 %v69, %v67
    %v71 = vadd.f32 %v70, 1599.0425
    %v72 = vmul.f32 %v71, %v67
    %v73 = vadd.f32 %v72, 24165.51
    %v74 = vmul.f32 %v73, %v67
    %v75 = vadd.f32 %v74, 228235.22
    %v76 = vmul.f32 %v75, %v67
    %v77 = vadd.f32 %v76, 1379496.3
    %v78 = vmul.f32 %v77, %v67
    %v79 = vadd.f32 %v78, 5210869.0
    %v80 = vmul.f32 %v79, %v67
    %v81 = vadd.f32 %v80, 11246929.0
    %v82 = vmul.f32 %v81, %v67
    %v83 = vadd.f32 %v82, 10619610.0
    %v84 = vadd.f32 %v67, 1.0
    %v85 = vadd.f32 %v67, 2.0
    %v86 = vmul.f32 %v84, %v85
    %v87 = vadd.f32 %v67, 3.0
    %v88 = vmul.f32 %v86, %v87
    %v89 = vadd.f32 %v67, 4.0
    %v90 = vmul.f32 %v88, %v89
    %v91 = vadd.f32 %v67, 5.0
    %v92 = vmul.f32 %v90, %v91
    %v93 = vadd.f32 %v67, 6.0
    %v94 = vmul.f32 %v92, %v93
    %v95 = vadd.f32 %v67, 7.0
    %v96 = vmul.f32 %v94, %v95
    %v97 = vadd.f32 %v67, 8.0
    %v98 = vmul.f32 %v96, %v97
    %v99 = vadd.f32 %v68, 60.458332
    %v100 = vmul.f32 %v99, %v68
    %v101 = vadd.f32 %v100, 1599.0425
    %v102 = vmul.f32 %v101, %v68
    %v103 = vadd.f32 %v102, 24165.51
    %v104 = vmul.f32 %v103, %v68
    %v105 = vadd.f32 %v104, 228235.22
    %v106 = vmul.f32 %v105, %v68
    %v107 = vadd.f32 %v106, 1379496.3
    %v108 = vmul.f32 %v107, %v68
    %v109 = vadd.f32 %v108, 5210869.0
    %v110 = vmul.f32 %v109, %v68
    %v111 = vadd.f32 %v110, 11246929.0
    %v112 = vmul.f32 %v111, %v68
    %v113 = vadd.f32 %v112, 10619610.0
    %v114 = vadd.f32 %v68, 1.0
    %v115 = vadd.f32 %v68, 2.0
    %v116 = vmul.f32 %v114, %v115
    %v117 = vadd.f32 %v68, 3.0
    %v118 = vmul.f32 %v116, %v117
    %v119 = vadd.f32 %v68, 4.0
    %v120 = vmul.f32 %v118, %v119
    %v121 = vadd.f32 %v68, 5.0
    %v122 = vmul.f32 %v120, %v121
    %v123 = vadd.f32 %v68, 6.0
    %v124 = vmul.f32 %v122, %v123
    %v125 = vadd.f32 %v68, 7.0
    %v126 = vmul.f32 %v124, %v125
    %v127 = vadd.f32 %v68, 8.0
    %v128 = vmul.f32 %v126, %v127
    %v129 = vadd.f32 %v42, 6.5
    %v130 = vadd.f32 %v42, 7.0
    %v131 = vlog2.pop %v129
    %v132 = vmul.f32 %v131, 0.6931472
    %v133 = vmul.f32 %v68, %v132
    %v134 = vlog2.pop %v130
    %v135 = vmul.f32 %v134, 0.6931472
    %v136 = vmul.f32 %v42, %v135
    %v137 = vsub.f32 %v133, %v136
    %v138 = vadd.f32 %v137, 0.5
    %v139 = vrcp.pop %v113
    %v140 = vmul.f32 %v83, %v139
    %v141 = vrcp.pop %v98
    %v142 = vmul.f32 %v128, %v141
    %v143 = vmul.f32 %v140, %v142
    %v144 = vlog2.pop %v143
    %v145 = vmul.f32 %v144, 0.6931472
    %v146 = vadd.f32 %v138, %v145
    %v147 = vadd.f32 %v66, %v146
    %v148 = vmax.f32 %v147, 0.0
    %v149 = vadd.f32 %v49, 1e-06
    %v150 = vand.u32 2147483647, %v149
    %v151 = vmul.f32 %v40, 2.0
    %v152 = vadd.f32 %v151, %v42
    %v153 = vmul.f32 %v150, %v152
    %v154 = vmul.f32 %v153, 0.5
    %v155 = vadd.f32 %v148, %v154
    %156 = vst [vmem:[#allocation7] sm:$0xff] %v155
    %s157 = scalar_lea.vmem [#allocation7], 8
    %158 = vst [vmem:[%s157] sm:$0xff] %v148
    // Predicated region
    $region18: #{tpu_custom_call.1} parent=1 // pred_check
      _
    $region19: #{tpu_custom_call.1} parent=1 // pred_check_branch
      %160 = sbr.rel (0) target = $region21
    $region20: #{tpu_custom_call.1} parent=1 // pred_region
      %s162 = ssub.s32 256, 256
      %163 = vsyncadd [#allocation4], %s162
      %s164 = sshll.u32 [#allocation7], 4
      %s165 = int_to_ptr.vmem [resolvable:$true] %s164
      %170 = dma.vmem_to_hbm [thread:$0]  %s165, 256, %s2, [#allocation4], 128, 128, 8
    $region21: #{tpu_custom_call.1} parent=1 // pred_fallthru
      _
    // Predicated region
    $region22: #{tpu_custom_call.1} parent=1 // pred_check
      _
    $region23: #{tpu_custom_call.1} parent=1 // pred_check_branch
      %172 = sbr.rel (0) target = $region25
    $region24: #{tpu_custom_call.1} parent=1 // pred_region
      %173 = dma.done [#allocation4], 256
    $region25: #{tpu_custom_call.1} parent=1 // pred_fallthru
      _
    %174 = vsyncpa [#allocation3], 1
    %175 = vsyncpa [#allocation6], 1
    %176 = vsyncpa [#allocation4], 1

</llo_original>
